<compile_context>
chip_gen: v6e
topology: v6e:2x2x1
jax: 0.10.0
libtpu: 0.0.40
codegen_flags: <defaults>
</compile_context>

<pallas_src>
import math

import jax
import jax.numpy as jnp
from jax.experimental import pallas as pl
from jax.experimental.pallas import tpu as pltpu


def _mlp_kernel(x_ref, w1_ref, b1_ref, w2_ref, b2_ref, o_ref):
    # One batch tile per grid step. Weight/bias blocks are grid-invariant, so
    # they are not re-DMA'd between steps.
    x = x_ref[...]
    h = jnp.dot(x, w1_ref[...], preferred_element_type=jnp.float32)
    h = jnp.maximum(h + b1_ref[...], 0.0)                      # bias + ReLU (VPU)
    o = jnp.dot(h.astype(w2_ref.dtype), w2_ref[...],
                preferred_element_type=jnp.float32)
    o_ref[...] = (o + b2_ref[...]).astype(o_ref.dtype)


def simple_mlp(x, w1, b1, w2, b2, *, block_b=256):
    """Fused MLP forward: relu(x @ w1 + b1) @ w2 + b2.

    x:  (B, D_in) float32
    w1: (D_in, H), b1: (H,)      -- PyTorch weight already transposed
    w2: (H, D_out), b2: (D_out,)
    """
    B, D_in = x.shape
    H = w1.shape[1]
    D_out = w2.shape[1]

    b1_2d = b1.reshape(1, H)
    b2_2d = b2.reshape(1, D_out)

    # Batch tiling: full-extent single block for small B, otherwise tiles of
    # `block_b` rows (multiple of 8) with zero-padding of the remainder.
    if B <= block_b:
        tb = B
        b_pad = B
    else:
        tb = block_b
        b_pad = pl.cdiv(B, tb) * tb

    x_p = x if b_pad == B else jnp.pad(x, ((0, b_pad - B), (0, 0)))
    grid = (b_pad // tb,)

    flops = 2 * b_pad * (D_in * H + H * D_out)
    bytes_accessed = 4 * (b_pad * D_in + D_in * H + H
                          + H * D_out + D_out + b_pad * D_out)

    out = pl.pallas_call(
        _mlp_kernel,
        out_shape=jax.ShapeDtypeStruct((b_pad, D_out), x.dtype),
        grid_spec=pltpu.PrefetchScalarGridSpec(
            num_scalar_prefetch=0,
            grid=grid,
            in_specs=[
                pl.BlockSpec((tb, D_in), lambda i: (i, 0)),   # x batch tile
                pl.BlockSpec((D_in, H), lambda i: (0, 0)),    # w1 (VMEM resident)
                pl.BlockSpec((1, H), lambda i: (0, 0)),       # b1 (VMEM resident)
                pl.BlockSpec((H, D_out), lambda i: (0, 0)),   # w2 (VMEM resident)
                pl.BlockSpec((1, D_out), lambda i: (0, 0)),   # b2 (VMEM resident)
            ],
            out_specs=pl.BlockSpec((tb, D_out), lambda i: (i, 0)),
        ),
        compiler_params=pltpu.CompilerParams(
            dimension_semantics=("parallel",),
        ),
        cost_estimate=pl.CostEstimate(
            flops=flops, transcendentals=0, bytes_accessed=bytes_accessed),
    )(x_p, w1, b1_2d, w2, b2_2d)

    return out[:B] if b_pad != B else out


if __name__ == "__main__":
    key = jax.random.PRNGKey(0)
    kx, kw1, kb1, kw2, kb2 = jax.random.split(key, 5)

    # Small shapes consistent with the module.
    batch, input_size, hidden_size, output_size = 16, 16, 32, 8
    x = jax.random.normal(kx, (batch, input_size), dtype=jnp.float32)

    # nn.Linear-style init: U(-1/sqrt(fan_in), 1/sqrt(fan_in)); weights are
    # stored already transposed to (in_features, out_features).
    lim1 = 1.0 / math.sqrt(input_size)
    w1 = jax.random.uniform(kw1, (input_size, hidden_size), jnp.float32, -lim1, lim1)
    b1 = jax.random.uniform(kb1, (hidden_size,), jnp.float32, -lim1, lim1)
    lim2 = 1.0 / math.sqrt(hidden_size)
    w2 = jax.random.uniform(kw2, (hidden_size, output_size), jnp.float32, -lim2, lim2)
    b2 = jax.random.uniform(kb2, (output_size,), jnp.float32, -lim2, lim2)

    out = simple_mlp(x, w1, b1, w2, b2)
    out = jax.block_until_ready(out)

    # Pure-JAX reference of the PyTorch forward.
    ref = jnp.maximum(x @ w1 + b1, 0.0) @ w2 + b2
    assert jnp.allclose(out, ref, atol=1e-5, rtol=1e-5), (out, ref)

    print("KERNEL_OK")
</pallas_src>

<mosaic_0001>
module attributes {stable_mosaic.version = 11 : i64} {
  func.func @_mlp_kernel(%arg0: i32, %arg1: memref<16x16xf32, #tpu.memory_space<vmem>>, %arg2: memref<16x32xf32, #tpu.memory_space<vmem>>, %arg3: memref<1x32xf32, #tpu.memory_space<vmem>>, %arg4: memref<32x8xf32, #tpu.memory_space<vmem>>, %arg5: memref<1x8xf32, #tpu.memory_space<vmem>>, %arg6: memref<16x8xf32, #tpu.memory_space<vmem>>) attributes {dimension_semantics = [#tpu.dimension_semantics<parallel>], iteration_bounds = array<i64: 1>, scalar_prefetch = 0 : i64, scratch_operands = 0 : i64, tpu.core_type = #tpu.core_type<tc>, window_params = [{transform_indices = @transform_0, window_bounds = array<i64: 16, 16>}, {pipeline_mode = #tpu.pipeline_mode<synchronous>, transform_indices = @transform_1, window_bounds = array<i64: 16, 32>}, {pipeline_mode = #tpu.pipeline_mode<synchronous>, transform_indices = @transform_2, window_bounds = array<i64: 1, 32>}, {pipeline_mode = #tpu.pipeline_mode<synchronous>, transform_indices = @transform_3, window_bounds = array<i64: 32, 8>}, {pipeline_mode = #tpu.pipeline_mode<synchronous>, transform_indices = @transform_4, window_bounds = array<i64: 1, 8>}, {transform_indices = @transform_5, window_bounds = array<i64: 16, 8>}]} {
    %c0 = arith.constant 0 : index
    %c0_0 = arith.constant 0 : index
    %0 = vector.load %arg1[%c0, %c0_0] : memref<16x16xf32, #tpu.memory_space<vmem>>, vector<16x16xf32>
    %c0_1 = arith.constant 0 : index
    %c0_2 = arith.constant 0 : index
    %1 = vector.load %arg2[%c0_1, %c0_2] : memref<16x32xf32, #tpu.memory_space<vmem>>, vector<16x32xf32>
    %cst = arith.constant dense<0.000000e+00> : vector<16x32xf32>
    %2 = tpu.matmul %0, %1, %cst {dimension_numbers = #tpu.dot_dimension_numbers<[1], [0], [0], [1], [0, 0, 1, 1], [], []>} : vector<16x16xf32>, vector<16x32xf32>, vector<16x32xf32> -> vector<16x32xf32>
    %c0_3 = arith.constant 0 : index
    %c0_4 = arith.constant 0 : index
    %3 = vector.load %arg3[%c0_3, %c0_4] : memref<1x32xf32, #tpu.memory_space<vmem>>, vector<1x32xf32>
    %4 = vector.broadcast %3 : vector<1x32xf32> to vector<16x32xf32>
    %5 = arith.addf %2, %4 : vector<16x32xf32>
    %cst_5 = arith.constant 0.000000e+00 : f32
    %6 = vector.broadcast %cst_5 : f32 to vector<16x32xf32>
    %7 = arith.maximumf %5, %6 : vector<16x32xf32>
    %c0_6 = arith.constant 0 : index
    %c0_7 = arith.constant 0 : index
    %8 = vector.load %arg4[%c0_6, %c0_7] : memref<32x8xf32, #tpu.memory_space<vmem>>, vector<32x8xf32>
    %cst_8 = arith.constant dense<0.000000e+00> : vector<16x8xf32>
    %9 = tpu.matmul %7, %8, %cst_8 {dimension_numbers = #tpu.dot_dimension_numbers<[1], [0], [0], [1], [0, 0, 1, 1], [], []>} : vector<16x32xf32>, vector<32x8xf32>, vector<16x8xf32> -> vector<16x8xf32>
    %c0_9 = arith.constant 0 : index
    %c0_10 = arith.constant 0 : index
    %10 = vector.load %arg5[%c0_9, %c0_10] : memref<1x8xf32, #tpu.memory_space<vmem>>, vector<1x8xf32>
    %11 = vector.broadcast %10 : vector<1x8xf32> to vector<16x8xf32>
    %12 = arith.addf %9, %11 : vector<16x8xf32>
    %c0_11 = arith.constant 0 : index
    %c0_12 = arith.constant 0 : index
    %13 = vector.load %arg6[%c0_11, %c0_12] : memref<16x8xf32, #tpu.memory_space<vmem>>, vector<16x8xf32>
    tpu.vector_store %arg6[%c0_11, %c0_12], %12 {strides = array<i32>} : memref<16x8xf32, #tpu.memory_space<vmem>>, vector<16x8xf32>,
    return
  }
  func.func @transform_0(%arg0: i32) -> (i32, i32) {
    %c0_i32 = arith.constant 0 : i32
    %c0_i32_0 = arith.constant 0 : i32
    return %arg0, %c0_i32 : i32, i32
  }
  func.func @transform_1(%arg0: i32) -> (i32, i32) {
    %c0_i32 = arith.constant 0 : i32
    %c0_i32_0 = arith.constant 0 : i32
    %c0_i32_1 = arith.constant 0 : i32
    return %c0_i32, %c0_i32_0 : i32, i32
  }
  func.func @transform_2(%arg0: i32) -> (i32, i32) {
    %c0_i32 = arith.constant 0 : i32
    %c0_i32_0 = arith.constant 0 : i32
    %c0_i32_1 = arith.constant 0 : i32
    return %c0_i32, %c0_i32_0 : i32, i32
  }
  func.func @transform_3(%arg0: i32) -> (i32, i32) {
    %c0_i32 = arith.constant 0 : i32
    %c0_i32_0 = arith.constant 0 : i32
    %c0_i32_1 = arith.constant 0 : i32
    return %c0_i32, %c0_i32_0 : i32, i32
  }
  func.func @transform_4(%arg0: i32) -> (i32, i32) {
    %c0_i32 = arith.constant 0 : i32
    %c0_i32_0 = arith.constant 0 : i32
    %c0_i32_1 = arith.constant 0 : i32
    return %c0_i32, %c0_i32_0 : i32, i32
  }
  func.func @transform_5(%arg0: i32) -> (i32, i32) {
    %c0_i32 = arith.constant 0 : i32
    %c0_i32_0 = arith.constant 0 : i32
    return %arg0, %c0_i32 : i32, i32
  }
}

</mosaic_0001>

<llo_original>
// kernel: tpu_custom_call.1
$region0: #{tpu_custom_call.1}
  #allocation0 [shape = 'u32[]', space=smem, size = 0x4, offset = 0x4, fixed_abs, tag = 'smem constant byte address 0x4 - core index']
  #allocation1 [shape = 'u32[144,128]{1,0:T(1,128)}', space=vmem, size = 0x12000, scoped, tag = 'internal scratch']
  %s0 = inlined_call_operand.vmem [shape: f32[16,16], index: 0, kind: input, shape index: {}]
  %s1 = inlined_call_operand.vmem [shape: f32[16,32], index: 1, kind: input, shape index: {}]
  %s2 = inlined_call_operand.vmem [shape: f32[1,32], index: 2, kind: input, shape index: {}]
  %s3 = inlined_call_operand.vmem [shape: f32[32,8], index: 3, kind: input, shape index: {}]
  %s4 = inlined_call_operand.vmem [shape: f32[1,8], index: 4, kind: input, shape index: {}]
  %s5 = inlined_call_operand.vmem [shape: f32[16,8], index: 5, kind: output, shape index: {}]
  %s6 = sld [smem:[#allocation0]]
  $region30: #{tpu_custom_call.1} parent=0
    _
  %s8 = ssub.s32 1, %s6
  %s9 = scalar_select 0, %s8, %s6
  // Predicated region
  $region2: #{tpu_custom_call.1} parent=0 // pred_check
    _
  $region3: #{tpu_custom_call.1} parent=0 // pred_check_branch
    %11 = sbr.rel (0) target = $region5
  $region4: #{tpu_custom_call.1} parent=0 // pred_region
    _
  $region5: #{tpu_custom_call.1} parent=0 // pred_fallthru
    _
  // Predicated region
  $region6: #{tpu_custom_call.1} parent=0 // pred_check
    _
  $region7: #{tpu_custom_call.1} parent=0 // pred_check_branch
    %13 = sbr.rel (0) target = $region9
  $region8: #{tpu_custom_call.1} parent=0 // pred_region
    _
  $region9: #{tpu_custom_call.1} parent=0 // pred_fallthru
    _
  // Predicated region
  $region10: #{tpu_custom_call.1} parent=0 // pred_check
    _
  $region11: #{tpu_custom_call.1} parent=0 // pred_check_branch
    %15 = sbr.rel (0) target = $region13
  $region12: #{tpu_custom_call.1} parent=0 // pred_region
    _
  $region13: #{tpu_custom_call.1} parent=0 // pred_fallthru
    _
  // Predicated region
  $region14: #{tpu_custom_call.1} parent=0 // pred_check
    _
  $region15: #{tpu_custom_call.1} parent=0 // pred_check_branch
    %17 = sbr.rel (0) target = $region17
  $region16: #{tpu_custom_call.1} parent=0 // pred_region
    _
  $region17: #{tpu_custom_call.1} parent=0 // pred_fallthru
    _
  // Predicated region
  $region18: #{tpu_custom_call.1} parent=0 // pred_check
    _
  $region19: #{tpu_custom_call.1} parent=0 // pred_check_branch
    %19 = sbr.rel (0) target = $region21
  $region20: #{tpu_custom_call.1} parent=0 // pred_region
    _
  $region21: #{tpu_custom_call.1} parent=0 // pred_fallthru
    _
  %v20 = vld [vmem:[%s0] sm:$0xff]
  %v21 = vld [vmem:[%s0 + $0x8] sm:$0xff]
  %v22 = vld [vmem:[%s1] sm:$0xff]
  %v23 = vld [vmem:[%s1 + $0x8] sm:$0xff]
  %v24 = vld [vmem:[%s2] sm:$0x1]
  %v26 = vlaneseq
  %v27 = vshrl.u32 %v26, 7
  %v28 = vsub.s32 0, %v27
  %v29 = vrot.slane %v24, %v28
  %vm31 = vcmask 130048
  %v33 = vsel %vm31, %v20, 0
  %v36 = vsel %vm31, %v21, 0
  %38 = vmatprep.subr.mxu0 0.0
  %39 = vmatpush1.msra.mxu0 0.0
  %40 = vmatprep.subr.mxu0 0.0
  %41 = vmatpush1.msra.mxu0 0.0
  %42 = vmatprep.subr.mxu0 0.0
  %43 = vmatpush1.msra.mxu0 0.0
  %44 = vmatprep.subr.mxu0 0.0
  %45 = vmatpush1.msra.mxu0 0.0
  %46 = vmatprep.subr.mxu0 0.0
  %47 = vmatpush1.msra.mxu0 0.0
  %48 = vmatprep.subr.mxu0 0.0
  %49 = vmatpush1.msra.mxu0 0.0
  %50 = vmatprep.subr.mxu0 0.0
  %51 = vmatpush1.msra.mxu0 0.0
  %52 = vmatprep.subr.mxu0 0.0
  %53 = vmatpush1.msra.mxu0 0.0
  %54 = vmatprep.subr.mxu0 0.0
  %55 = vmatpush1.msra.mxu0 0.0
  %56 = vmatprep.subr.mxu0 0.0
  %57 = vmatpush1.msra.mxu0 0.0
  %58 = vmatprep.subr.mxu0 0.0
  %59 = vmatpush1.msra.mxu0 0.0
  %60 = vmatprep.subr.mxu0 0.0
  %61 = vmatpush1.msra.mxu0 0.0
  %62 = vmatprep.subr.mxu0 0.0
  %63 = vmatpush1.msra.mxu0 0.0
  %64 = vmatprep.subr.mxu0 0.0
  %65 = vmatpush1.msra.mxu0 0.0
  %66 = vmatprep.subr.mxu0 0.0
  %67 = vmatpush1.msra.mxu0 %v23
  %68 = vmatprep.subr.mxu0 0.0
  %69 = vmatpush1.msra.mxu0 %v22
  %70 = vmatprep.subr.mxu0 0.0
  %71 = vmatpush2.msra.mxu0 0.0
  %72 = vmatprep.subr.mxu0 0.0
  %73 = vmatpush2.msra.mxu0 0.0
  %74 = vmatprep.subr.mxu0 0.0
  %75 = vmatpush2.msra.mxu0 0.0
  %76 = vmatprep.subr.mxu0 0.0
  %77 = vmatpush2.msra.mxu0 0.0
  %78 = vmatprep.subr.mxu0 0.0
  %79 = vmatpush2.msra.mxu0 0.0
  %80 = vmatprep.subr.mxu0 0.0
  %81 = vmatpush2.msra.mxu0 0.0
  %82 = vmatprep.subr.mxu0 0.0
  %83 = vmatpush2.msra.mxu0 0.0
  %84 = vmatprep.subr.mxu0 0.0
  %85 = vmatpush2.msra.mxu0 0.0
  %86 = vmatprep.subr.mxu0 0.0
  %87 = vmatpush2.msra.mxu0 0.0
  %88 = vmatprep.subr.mxu0 0.0
  %89 = vmatpush2.msra.mxu0 0.0
  %90 = vmatprep.subr.mxu0 0.0
  %91 = vmatpush2.msra.mxu0 0.0
  %92 = vmatprep.subr.mxu0 0.0
  %93 = vmatpush2.msra.mxu0 0.0
  %94 = vmatprep.subr.mxu0 0.0
  %95 = vmatpush2.msra.mxu0 0.0
  %96 = vmatprep.subr.mxu0 0.0
  %97 = vmatpush2.msra.mxu0 0.0
  %98 = vmatprep.subr.mxu0 0.0
  %99 = vmatpush2.msra.mxu0 0.0
  %100 = vmatprep.subr.mxu0 0.0
  %101 = vmatpush2.msra.mxu0 0.0
  %102 = vmatprep.mubr.f32.mxu0 0.0
  %103 = vmatmul.mubr.f32.gmra.mxu0 %v33
  %v104 = vpop.f32.mrf.mxu0
  %v105 = vadd.f32 %v29, %v104
  %v106 = vpop.f32.mrf.mxu0
  %107 = vmatprep.mubr.f32.mxu0 0.0
  %108 = vmatmul.mubr.f32.gmra.mxu0 %v36
  %v109 = vpop.f32.mrf.mxu0
  %v110 = vadd.f32 %v29, %v109
  %v111 = vpop.f32.mrf.mxu0
  %112 = vdwg.mxu0
  %v113 = vmax.f32 %v105, 0.0
  %v114 = vmax.f32 %v110, 0.0
  %v115 = vld [vmem:[%s3] sm:$0xff]
  %v116 = vld [vmem:[%s3 + $0x8] sm:$0xff]
  %v117 = vld [vmem:[%s3 + $0x10] sm:$0xff]
  %v118 = vld [vmem:[%s3 + $0x18] sm:$0xff]
  %v119 = vld [vmem:[%s4] sm:$0x1]
  %v121 = vlaneseq
  %v122 = vshrl.u32 %v121, 7
  %v123 = vsub.s32 0, %v122
  %v124 = vrot.slane %v119, %v123
  %vm126 = vcmask 261120
  %v128 = vsel %vm126, %v113, 0
  %v131 = vsel %vm126, %v114, 0
  %133 = vmatprep.subr.mxu0 0.0
  %134 = vmatpush1.msra.mxu0 0.0
  %135 = vmatprep.subr.mxu0 0.0
  %136 = vmatpush1.msra.mxu0 0.0
  %137 = vmatprep.subr.mxu0 0.0
  %138 = vmatpush1.msra.mxu0 0.0
  %139 = vmatprep.subr.mxu0 0.0
  %140 = vmatpush1.msra.mxu0 0.0
  %141 = vmatprep.subr.mxu0 0.0
  %142 = vmatpush1.msra.mxu0 0.0
  %143 = vmatprep.subr.mxu0 0.0
  %144 = vmatpush1.msra.mxu0 0.0
  %145 = vmatprep.subr.mxu0 0.0
  %146 = vmatpush1.msra.mxu0 0.0
  %147 = vmatprep.subr.mxu0 0.0
  %148 = vmatpush1.msra.mxu0 0.0
  %149 = vmatprep.subr.mxu0 0.0
  %150 = vmatpush1.msra.mxu0 0.0
  %151 = vmatprep.subr.mxu0 0.0
  %152 = vmatpush1.msra.mxu0 0.0
  %153 = vmatprep.subr.mxu0 0.0
  %154 = vmatpush1.msra.mxu0 0.0
  %155 = vmatprep.subr.mxu0 0.0
  %156 = vmatpush1.msra.mxu0 0.0
  %157 = vmatprep.subr.mxu0 0.0
  %158 = vmatpush1.msra.mxu0 %v118
  %159 = vmatprep.subr.mxu0 0.0
  %160 = vmatpush1.msra.mxu0 %v117
  %161 = vmatprep.subr.mxu0 0.0
  %162 = vmatpush1.msra.mxu0 %v116
  %163 = vmatprep.subr.mxu0 0.0
  %164 = vmatpush1.msra.mxu0 %v115
  %165 = vmatprep.subr.mxu0 0.0
  %166 = vmatpush2.msra.mxu0 0.0
  %167 = vmatprep.subr.mxu0 0.0
  %168 = vmatpush2.msra.mxu0 0.0
  %169 = vmatprep.subr.mxu0 0.0
  %170 = vmatpush2.msra.mxu0 0.0
  %171 = vmatprep.subr.mxu0 0.0
  %172 = vmatpush2.msra.mxu0 0.0
  %173 = vmatprep.subr.mxu0 0.0
  %174 = vmatpush2.msra.mxu0 0.0
  %175 = vmatprep.subr.mxu0 0.0
  %176 = vmatpush2.msra.mxu0 0.0
  %177 = vmatprep.subr.mxu0 0.0
  %178 = vmatpush2.msra.mxu0 0.0
  %179 = vmatprep.subr.mxu0 0.0
  %180 = vmatpush2.msra.mxu0 0.0
  %181 = vmatprep.subr.mxu0 0.0
  %182 = vmatpush2.msra.mxu0 0.0
  %183 = vmatprep.subr.mxu0 0.0
  %184 = vmatpush2.msra.mxu0 0.0
  %185 = vmatprep.subr.mxu0 0.0
  %186 = vmatpush2.msra.mxu0 0.0
  %187 = vmatprep.subr.mxu0 0.0
  %188 = vmatpush2.msra.mxu0 0.0
  %189 = vmatprep.subr.mxu0 0.0
  %190 = vmatpush2.msra.mxu0 0.0
  %191 = vmatprep.subr.mxu0 0.0
  %192 = vmatpush2.msra.mxu0 0.0
  %193 = vmatprep.subr.mxu0 0.0
  %194 = vmatpush2.msra.mxu0 0.0
  %195 = vmatprep.subr.mxu0 0.0
  %196 = vmatpush2.msra.mxu0 0.0
  %197 = vmatprep.mubr.f32.mxu0 0.0
  %198 = vmatmul.mubr.f32.gmra.mxu0 %v128
  %v199 = vpop.f32.mrf.mxu0
  %v200 = vadd.f32 %v124, %v199
  %v201 = vpop.f32.mrf.mxu0
  %202 = vmatprep.mubr.f32.mxu0 0.0
  %203 = vmatmul.mubr.f32.gmra.mxu0 %v131
  %v204 = vpop.f32.mrf.mxu0
  %v205 = vadd.f32 %v124, %v204
  %v206 = vpop.f32.mrf.mxu0
  %207 = vdwg.mxu0
  %vm208 = vcmask 64512
  %209 = vst.msk [vmem:[%s5] sm:$0xff] %vm208, %v200
  %210 = vst.msk [vmem:[%s5 + $0x8] sm:$0xff] %vm208, %v205
  // Predicated region
  $region22: #{tpu_custom_call.1} parent=0 // pred_check
    _
  $region23: #{tpu_custom_call.1} parent=0 // pred_check_branch
    %212 = sbr.rel (0) target = $region25
  $region24: #{tpu_custom_call.1} parent=0 // pred_region
    _
  $region25: #{tpu_custom_call.1} parent=0 // pred_fallthru
    _
  // Predicated region
  $region26: #{tpu_custom_call.1} parent=0 // pred_check
    _
  $region27: #{tpu_custom_call.1} parent=0 // pred_check_branch
    %214 = sbr.rel (0) target = $region29
  $region28: #{tpu_custom_call.1} parent=0 // pred_region
    _
  $region29: #{tpu_custom_call.1} parent=0 // pred_fallthru
    _

</llo_original>
